<compile_context>
chip_gen: v7x
topology: tpu7x:2x2x1
jax: 0.10.0
libtpu: 0.0.40
codegen_flags: <defaults>
</compile_context>

<pallas_src>
import jax
import jax.numpy as jnp
from jax.experimental import pallas as pl
from jax.experimental.pallas import tpu as pltpu


# -----------------------------------------------------------------------------
# Pallas kernel: fused  Linear -> ReLU -> [BN folded] -> Linear -> ReLU ->
#                       [BN folded] -> Linear  (output lane-padded to 128)
# -----------------------------------------------------------------------------
def fusion_mlp_kernel(xa_ref, xb_ref,
                      w1a_ref, w1b_ref, b1_ref,
                      w2_ref, b2_ref,
                      w3_ref, b3_ref,
                      o_ref):
    cdt = w1a_ref.dtype  # MXU input dtype (f32 or bf16); accumulation is f32.

    # Layer 1: Linear(6E -> 3E) split over the two concat halves, + ReLU.
    h1 = jnp.dot(xa_ref[...], w1a_ref[...], preferred_element_type=jnp.float32)
    h1 = h1 + jnp.dot(xb_ref[...], w1b_ref[...],
                      preferred_element_type=jnp.float32)
    h1 = jnp.maximum(h1 + b1_ref[...], 0.0)
    # BN1 (eval) folded into w2/b2; Dropout is identity in eval mode.

    # Layer 2: Linear(3E -> 2E) + ReLU.
    h2 = jnp.dot(h1.astype(cdt), w2_ref[...],
                 preferred_element_type=jnp.float32)
    h2 = jnp.maximum(h2 + b2_ref[...], 0.0)
    # BN2 (eval) folded into w3/b3; Dropout is identity in eval mode.

    # Layer 3: Linear(2E -> 65), zero-padded to 128 lanes.
    out = jnp.dot(h2.astype(cdt), w3_ref[...],
                  preferred_element_type=jnp.float32)
    o_ref[...] = (out + b3_ref[...]).astype(o_ref.dtype)


def fusion_mlp_pallas(xa, xb, p, *, tile_b=256):
    """xa, xb: (B, 3E) f32 halves of the concatenated pair embedding."""
    B, d_half = xa.shape
    d1 = p["w1a"].shape[1]
    d2 = p["w2"].shape[1]
    d_out_pad = p["w3"].shape[1]
    d_out = p["d_out"]
    cdt = p["w1a"].dtype

    # Round the batch up to a sublane multiple; small batches -> one grid step.
    b8 = max(8, ((B + 7) // 8) * 8)
    if b8 <= tile_b:
        tile_b = b8
        b_pad = b8
    else:
        b_pad = ((B + tile_b - 1) // tile_b) * tile_b
    if b_pad != B:
        pad = b_pad - B
        xa = jnp.pad(xa, ((0, pad), (0, 0)))
        xb = jnp.pad(xb, ((0, pad), (0, 0)))
    xa = xa.astype(cdt)
    xb = xb.astype(cdt)

    grid = (b_pad // tile_b,)

    def const_spec(shape):
        # Constant block index: weight/bias stays resident across the batch grid.
        return pl.BlockSpec(shape, lambda i: (0,) * len(shape))

    itemsize = p["w1a"].dtype.itemsize
    flops = 2 * b_pad * (2 * d_half * d1 + d1 * d2 + d2 * d_out_pad)
    bytes_accessed = (
        (xa.size + xb.size) * itemsize
        + (p["w1a"].size + p["w1b"].size + p["w2"].size + p["w3"].size) * itemsize
        + (p["b1"].size + p["b2"].size + p["b3"].size) * 4
        + b_pad * d_out_pad * 4)

    out = pl.pallas_call(
        fusion_mlp_kernel,
        out_shape=jax.ShapeDtypeStruct((b_pad, d_out_pad), jnp.float32),
        grid_spec=pltpu.PrefetchScalarGridSpec(
            num_scalar_prefetch=0,
            grid=grid,
            in_specs=[
                pl.BlockSpec((tile_b, d_half), lambda i: (i, 0)),   # xa tile
                pl.BlockSpec((tile_b, d_half), lambda i: (i, 0)),   # xb tile
                const_spec((d_half, d1)), const_spec((d_half, d1)),
                const_spec((1, d1)),
                const_spec((d1, d2)), const_spec((1, d2)),
                const_spec((d2, d_out_pad)), const_spec((1, d_out_pad)),
            ],
            out_specs=pl.BlockSpec((tile_b, d_out_pad), lambda i: (i, 0)),
        ),
        compiler_params=pltpu.CompilerParams(
            dimension_semantics=("parallel",)),
        cost_estimate=pl.CostEstimate(
            flops=int(flops), transcendentals=0,
            bytes_accessed=int(bytes_accessed)),
    )(xa, xb, p["w1a"], p["w1b"], p["b1"], p["w2"], p["b2"], p["w3"], p["b3"])

    return out[:B, :d_out]


# -----------------------------------------------------------------------------
# Parameter construction (deterministic, mirrors the PyTorch __init__)
# -----------------------------------------------------------------------------
def xavier_uniform(key, fan_in, fan_out):
    bound = jnp.sqrt(6.0 / (fan_in + fan_out))
    return jax.random.uniform(key, (fan_in, fan_out), jnp.float32,
                              minval=-bound, maxval=bound)


def make_raw_params(key, embedding_num):
    """PyTorch-equivalent parameters: Linear weights [in, out], zero biases,
    BatchNorm1d gamma=1, beta=0, running_mean=0, running_var=1."""
    e = embedding_num
    d_in, d1, d2, d_out = 6 * e, 3 * e, 2 * e, 65
    k1, k2, k3 = jax.random.split(key, 3)

    def bn(dim):
        return {"gamma": jnp.ones((dim,), jnp.float32),
                "beta": jnp.zeros((dim,), jnp.float32),
                "mean": jnp.zeros((dim,), jnp.float32),
                "var": jnp.ones((dim,), jnp.float32)}

    return {
        "w1": xavier_uniform(k1, d_in, d1), "b1": jnp.zeros((d1,), jnp.float32),
        "bn1": bn(d1),
        "w2": xavier_uniform(k2, d1, d2), "b2": jnp.zeros((d2,), jnp.float32),
        "bn2": bn(d2),
        "w3": xavier_uniform(k3, d2, d_out), "b3": jnp.zeros((d_out,), jnp.float32),
    }


def fold_inference_params(raw, compute_dtype=jnp.float32, eps=1e-5):
    """Fold eval-mode BatchNorm into the following Linear, pad the output dim
    to a lane-dense 128, split w1 into the two concat halves, and cast the
    matmul operands to `compute_dtype` (bf16 recommended on v6e/v7x)."""
    w1, b1 = raw["w1"], raw["b1"]
    w2, b2 = raw["w2"], raw["b2"]
    w3, b3 = raw["w3"], raw["b3"]

    def bn_affine(bn):
        s = bn["gamma"] / jnp.sqrt(bn["var"] + eps)
        t = bn["beta"] - bn["mean"] * s
        return s, t

    s1, t1 = bn_affine(raw["bn1"])
    s2, t2 = bn_affine(raw["bn2"])

    # relu(x@w1+b1) * s1 + t1, then @ w2 + b2  ==  relu(x@w1+b1) @ w2' + b2'
    w2f = w2 * s1[:, None]
    b2f = b2 + t1 @ w2
    w3f = w3 * s2[:, None]
    b3f = b3 + t2 @ w3

    d2, d_out = w3f.shape
    d_out_pad = ((d_out + 127) // 128) * 128
    w3p = jnp.zeros((d2, d_out_pad), jnp.float32).at[:, :d_out].set(w3f)
    b3p = jnp.zeros((d_out_pad,), jnp.float32).at[:d_out].set(b3f)

    d_half = w1.shape[0] // 2
    return {
        "w1a": w1[:d_half].astype(compute_dtype),
        "w1b": w1[d_half:].astype(compute_dtype),
        "b1": b1.reshape(1, -1).astype(jnp.float32),
        "w2": w2f.astype(compute_dtype),
        "b2": b2f.reshape(1, -1).astype(jnp.float32),
        "w3": w3p.astype(compute_dtype),
        "b3": b3p.reshape(1, -1).astype(jnp.float32),
        "d_out": d_out,
    }


# -----------------------------------------------------------------------------
# Full FusionLayer forward: stacked-table gather (glue) + fused Pallas MLP
# -----------------------------------------------------------------------------
def fusion_layer_forward(gnn3_emb, gnn2_emb, gnn1_emb, idx, inf_params,
                         *, tile_b=256):
    # Pre-stack the three GNN tables -> (n_drugs, 3E); 2 gathers instead of 6.
    table = jnp.concatenate([gnn1_emb, gnn2_emb, gnn3_emb],
                            axis=1).astype(jnp.float32)
    xa = table[idx[:, 0]]      # [gnn1[A], gnn2[A], gnn3[A]]
    xb = table[idx[:, 1]]      # [gnn1[B], gnn2[B], gnn3[B]]
    # TODO(synk): fully fusing the gather into the kernel (scalar-prefetched idx
    # + per-row DMA) is possible but conflicts with large batch tiles; the
    # stacked-table 2-gather glue is kept in plain JAX.
    return fusion_mlp_pallas(xa, xb, inf_params, tile_b=tile_b)


# -----------------------------------------------------------------------------
# Plain-JAX reference of the original (unfolded) eval-mode forward
# -----------------------------------------------------------------------------
def fusion_mlp_reference(x, raw, eps=1e-5):
    def bn(h, p):
        return (h - p["mean"]) / jnp.sqrt(p["var"] + eps) * p["gamma"] + p["beta"]
    h = jnp.maximum(x @ raw["w1"] + raw["b1"], 0.0)
    h = bn(h, raw["bn1"])
    h = jnp.maximum(h @ raw["w2"] + raw["b2"], 0.0)
    h = bn(h, raw["bn2"])
    return h @ raw["w3"] + raw["b3"]


if __name__ == "__main__":
    # TODO(synk): Dropout / training-mode BatchNorm (batch statistics) are
    # stochastic / stateful; this implements the deterministic eval-mode forward.
    embedding_num = 64          # -> dims 384 / 192 / 128 / 65 (padded to 128)
    n_drugs = 10
    batch = 16                  # number of (drugA, drugB) pairs

    key = jax.random.PRNGKey(0)
    kp, k1, k2, k3, ki = jax.random.split(key, 5)

    raw = make_raw_params(kp, embedding_num)
    gnn1_embedding = jax.random.normal(k1, (n_drugs, embedding_num), jnp.float32)
    gnn2_embedding = jax.random.normal(k2, (n_drugs, embedding_num), jnp.float32)
    gnn3_embedding = jax.random.normal(k3, (n_drugs, embedding_num), jnp.float32)
    idx = jax.random.randint(ki, (batch, 2), 0, n_drugs, jnp.int32)

    # Reference input/output (original concat + unfolded BN math).
    drug_a, drug_b = idx[:, 0], idx[:, 1]
    x_ref = jnp.concatenate(
        [gnn1_embedding[drug_a], gnn2_embedding[drug_a], gnn3_embedding[drug_a],
         gnn1_embedding[drug_b], gnn2_embedding[drug_b], gnn3_embedding[drug_b]],
        axis=1)
    ref = fusion_mlp_reference(x_ref, raw)

    # 1) f32 MXU path (v5e-friendly), tight tolerance.
    p_f32 = fold_inference_params(raw, jnp.float32)
    out_f32 = jax.block_until_ready(
        fusion_layer_forward(gnn3_embedding, gnn2_embedding, gnn1_embedding,
                             idx, p_f32))
    assert out_f32.shape == (batch, 65), out_f32.shape
    assert jnp.allclose(out_f32, ref, atol=1e-4, rtol=1e-4)

    # 2) bf16 MXU path (v6e/v7x), f32 accumulation; looser tolerance.
    p_bf16 = fold_inference_params(raw, jnp.bfloat16)
    out_bf16 = jax.block_until_ready(
        fusion_layer_forward(gnn3_embedding, gnn2_embedding, gnn1_embedding,
                             idx, p_bf16))
    assert out_bf16.shape == (batch, 65)
    assert jnp.allclose(out_bf16, ref, atol=1e-1, rtol=1e-1)

    # 3) Ragged batch (B=13) with a small tile -> padded batch, multi-step grid.
    idx2 = jax.random.randint(jax.random.PRNGKey(1), (13, 2), 0, n_drugs,
                              jnp.int32)
    a2, b2_ = idx2[:, 0], idx2[:, 1]
    x_ref2 = jnp.concatenate(
        [gnn1_embedding[a2], gnn2_embedding[a2], gnn3_embedding[a2],
         gnn1_embedding[b2_], gnn2_embedding[b2_], gnn3_embedding[b2_]], axis=1)
    ref2 = fusion_mlp_reference(x_ref2, raw)
    out2 = jax.block_until_ready(
        fusion_layer_forward(gnn3_embedding, gnn2_embedding, gnn1_embedding,
                             idx2, p_f32, tile_b=8))
    assert out2.shape == (13, 65)
    assert jnp.allclose(out2, ref2, atol=1e-4, rtol=1e-4)

    print("KERNEL_OK")
</pallas_src>

<mosaic_0001>
module attributes {stable_mosaic.version = 11 : i64} {
  func.func @fusion_mlp_kernel(%arg0: i32, %arg1: memref<16x192xf32, #tpu.memory_space<vmem>>, %arg2: memref<16x192xf32, #tpu.memory_space<vmem>>, %arg3: memref<192x192xf32, #tpu.memory_space<vmem>>, %arg4: memref<192x192xf32, #tpu.memory_space<vmem>>, %arg5: memref<1x192xf32, #tpu.memory_space<vmem>>, %arg6: memref<192x128xf32, #tpu.memory_space<vmem>>, %arg7: memref<1x128xf32, #tpu.memory_space<vmem>>, %arg8: memref<128x128xf32, #tpu.memory_space<vmem>>, %arg9: memref<1x128xf32, #tpu.memory_space<vmem>>, %arg10: memref<16x128xf32, #tpu.memory_space<vmem>>) attributes {dimension_semantics = [#tpu.dimension_semantics<parallel>], iteration_bounds = array<i64: 1>, scalar_prefetch = 0 : i64, scratch_operands = 0 : i64, tpu.core_type = #tpu.core_type<tc>, window_params = [{transform_indices = @transform_0, window_bounds = array<i64: 16, 192>}, {transform_indices = @transform_1, window_bounds = array<i64: 16, 192>}, {pipeline_mode = #tpu.pipeline_mode<synchronous>, transform_indices = @transform_2, window_bounds = array<i64: 192, 192>}, {pipeline_mode = #tpu.pipeline_mode<synchronous>, transform_indices = @transform_3, window_bounds = array<i64: 192, 192>}, {pipeline_mode = #tpu.pipeline_mode<synchronous>, transform_indices = @transform_4, window_bounds = array<i64: 1, 192>}, {pipeline_mode = #tpu.pipeline_mode<synchronous>, transform_indices = @transform_5, window_bounds = array<i64: 192, 128>}, {pipeline_mode = #tpu.pipeline_mode<synchronous>, transform_indices = @transform_6, window_bounds = array<i64: 1, 128>}, {pipeline_mode = #tpu.pipeline_mode<synchronous>, transform_indices = @transform_7, window_bounds = array<i64: 128, 128>}, {pipeline_mode = #tpu.pipeline_mode<synchronous>, transform_indices = @transform_8, window_bounds = array<i64: 1, 128>}, {transform_indices = @transform_9, window_bounds = array<i64: 16, 128>}]} {
    %c0 = arith.constant 0 : index
    %c0_0 = arith.constant 0 : index
    %0 = vector.load %arg1[%c0, %c0_0] : memref<16x192xf32, #tpu.memory_space<vmem>>, vector<16x192xf32>
    %c0_1 = arith.constant 0 : index
    %c0_2 = arith.constant 0 : index
    %1 = vector.load %arg3[%c0_1, %c0_2] : memref<192x192xf32, #tpu.memory_space<vmem>>, vector<192x192xf32>
    %cst = arith.constant dense<0.000000e+00> : vector<16x192xf32>
    %2 = tpu.matmul %0, %1, %cst {dimension_numbers = #tpu.dot_dimension_numbers<[1], [0], [0], [1], [0, 0, 1, 1], [], []>} : vector<16x192xf32>, vector<192x192xf32>, vector<16x192xf32> -> vector<16x192xf32>
    %c0_3 = arith.constant 0 : index
    %c0_4 = arith.constant 0 : index
    %3 = vector.load %arg2[%c0_3, %c0_4] : memref<16x192xf32, #tpu.memory_space<vmem>>, vector<16x192xf32>
    %c0_5 = arith.constant 0 : index
    %c0_6 = arith.constant 0 : index
    %4 = vector.load %arg4[%c0_5, %c0_6] : memref<192x192xf32, #tpu.memory_space<vmem>>, vector<192x192xf32>
    %cst_7 = arith.constant dense<0.000000e+00> : vector<16x192xf32>
    %5 = tpu.matmul %3, %4, %cst_7 {dimension_numbers = #tpu.dot_dimension_numbers<[1], [0], [0], [1], [0, 0, 1, 1], [], []>} : vector<16x192xf32>, vector<192x192xf32>, vector<16x192xf32> -> vector<16x192xf32>
    %6 = arith.addf %2, %5 : vector<16x192xf32>
    %c0_8 = arith.constant 0 : index
    %c0_9 = arith.constant 0 : index
    %7 = vector.load %arg5[%c0_8, %c0_9] : memref<1x192xf32, #tpu.memory_space<vmem>>, vector<1x192xf32>
    %8 = vector.broadcast %7 : vector<1x192xf32> to vector<16x192xf32>
    %9 = arith.addf %6, %8 : vector<16x192xf32>
    %cst_10 = arith.constant 0.000000e+00 : f32
    %10 = vector.broadcast %cst_10 : f32 to vector<16x192xf32>
    %11 = arith.maximumf %9, %10 : vector<16x192xf32>
    %c0_11 = arith.constant 0 : index
    %c0_12 = arith.constant 0 : index
    %12 = vector.load %arg6[%c0_11, %c0_12] : memref<192x128xf32, #tpu.memory_space<vmem>>, vector<192x128xf32>
    %cst_13 = arith.constant dense<0.000000e+00> : vector<16x128xf32>
    %13 = tpu.matmul %11, %12, %cst_13 {dimension_numbers = #tpu.dot_dimension_numbers<[1], [0], [0], [1], [0, 0, 1, 1], [], []>} : vector<16x192xf32>, vector<192x128xf32>, vector<16x128xf32> -> vector<16x128xf32>
    %c0_14 = arith.constant 0 : index
    %c0_15 = arith.constant 0 : index
    %14 = vector.load %arg7[%c0_14, %c0_15] : memref<1x128xf32, #tpu.memory_space<vmem>>, vector<1x128xf32>
    %15 = vector.broadcast %14 : vector<1x128xf32> to vector<16x128xf32>
    %16 = arith.addf %13, %15 : vector<16x128xf32>
    %cst_16 = arith.constant 0.000000e+00 : f32
    %17 = vector.broadcast %cst_16 : f32 to vector<16x128xf32>
    %18 = arith.maximumf %16, %17 : vector<16x128xf32>
    %c0_17 = arith.constant 0 : index
    %c0_18 = arith.constant 0 : index
    %19 = vector.load %arg8[%c0_17, %c0_18] : memref<128x128xf32, #tpu.memory_space<vmem>>, vector<128x128xf32>
    %cst_19 = arith.constant dense<0.000000e+00> : vector<16x128xf32>
    %20 = tpu.matmul %18, %19, %cst_19 {dimension_numbers = #tpu.dot_dimension_numbers<[1], [0], [0], [1], [0, 0, 1, 1], [], []>} : vector<16x128xf32>, vector<128x128xf32>, vector<16x128xf32> -> vector<16x128xf32>
    %c0_20 = arith.constant 0 : index
    %c0_21 = arith.constant 0 : index
    %21 = vector.load %arg9[%c0_20, %c0_21] : memref<1x128xf32, #tpu.memory_space<vmem>>, vector<1x128xf32>
    %22 = vector.broadcast %21 : vector<1x128xf32> to vector<16x128xf32>
    %23 = arith.addf %20, %22 : vector<16x128xf32>
    %c0_22 = arith.constant 0 : index
    %c0_23 = arith.constant 0 : index
    %24 = vector.load %arg10[%c0_22, %c0_23] : memref<16x128xf32, #tpu.memory_space<vmem>>, vector<16x128xf32>
    tpu.vector_store %arg10[%c0_22, %c0_23], %23 {strides = array<i32>} : memref<16x128xf32, #tpu.memory_space<vmem>>, vector<16x128xf32>,
    return
  }
  func.func @transform_0(%arg0: i32) -> (i32, i32) {
    %c0_i32 = arith.constant 0 : i32
    %c0_i32_0 = arith.constant 0 : i32
    return %arg0, %c0_i32 : i32, i32
  }
  func.func @transform_1(%arg0: i32) -> (i32, i32) {
    %c0_i32 = arith.constant 0 : i32
    %c0_i32_0 = arith.constant 0 : i32
    return %arg0, %c0_i32 : i32, i32
  }
  func.func @transform_2(%arg0: i32) -> (i32, i32) {
    %c0_i32 = arith.constant 0 : i32
    %c0_i32_0 = arith.constant 0 : i32
    %c0_i32_1 = arith.constant 0 : i32
    return %c0_i32, %c0_i32_0 : i32, i32
  }
  func.func @transform_3(%arg0: i32) -> (i32, i32) {
    %c0_i32 = arith.constant 0 : i32
    %c0_i32_0 = arith.constant 0 : i32
    %c0_i32_1 = arith.constant 0 : i32
    return %c0_i32, %c0_i32_0 : i32, i32
  }
  func.func @transform_4(%arg0: i32) -> (i32, i32) {
    %c0_i32 = arith.constant 0 : i32
    %c0_i32_0 = arith.constant 0 : i32
    %c0_i32_1 = arith.constant 0 : i32
    return %c0_i32, %c0_i32_0 : i32, i32
  }
  func.func @transform_5(%arg0: i32) -> (i32, i32) {
    %c0_i32 = arith.constant 0 : i32
    %c0_i32_0 = arith.constant 0 : i32
    %c0_i32_1 = arith.constant 0 : i32
    return %c0_i32, %c0_i32_0 : i32, i32
  }
  func.func @transform_6(%arg0: i32) -> (i32, i32) {
    %c0_i32 = arith.constant 0 : i32
    %c0_i32_0 = arith.constant 0 : i32
    %c0_i32_1 = arith.constant 0 : i32
    return %c0_i32, %c0_i32_0 : i32, i32
  }
  func.func @transform_7(%arg0: i32) -> (i32, i32) {
    %c0_i32 = arith.constant 0 : i32
    %c0_i32_0 = arith.constant 0 : i32
    %c0_i32_1 = arith.constant 0 : i32
    return %c0_i32, %c0_i32_0 : i32, i32
  }
  func.func @transform_8(%arg0: i32) -> (i32, i32) {
    %c0_i32 = arith.constant 0 : i32
    %c0_i32_0 = arith.constant 0 : i32
    %c0_i32_1 = arith.constant 0 : i32
    return %c0_i32, %c0_i32_0 : i32, i32
  }
  func.func @transform_9(%arg0: i32) -> (i32, i32) {
    %c0_i32 = arith.constant 0 : i32
    %c0_i32_0 = arith.constant 0 : i32
    return %arg0, %c0_i32 : i32, i32
  }
}

</mosaic_0001>

<llo_original>
// kernel: tpu_custom_call.1
$region0: #{tpu_custom_call.1}
  #allocation0 [shape = 'u32[]', space=smem, size = 0x4, offset = 0x4, fixed_abs, tag = 'smem constant byte address 0x4 - core index']
  #allocation1 [shape = 'u32[144,128]{1,0:T(1,128)}', space=vmem, size = 0x12000, scoped, tag = 'internal scratch']
  %s0 = inlined_call_operand.hbm [shape: f32[16,192], index: 0, kind: input, shape index: {}]
  %s1 = inlined_call_operand.hbm [shape: f32[16,192], index: 1, kind: input, shape index: {}]
  %s2 = inlined_call_operand.hbm [shape: f32[192,192], index: 2, kind: input, shape index: {}]
  %s3 = inlined_call_operand.hbm [shape: f32[192,192], index: 3, kind: input, shape index: {}]
  %s4 = inlined_call_operand.vmem [shape: f32[1,192], index: 4, kind: input, shape index: {}]
  %s5 = inlined_call_operand.hbm [shape: f32[192,128], index: 5, kind: input, shape index: {}]
  %s6 = inlined_call_operand.vmem [shape: f32[1,128], index: 6, kind: input, shape index: {}]
  %s7 = inlined_call_operand.hbm [shape: f32[128,128], index: 7, kind: input, shape index: {}]
  %s8 = inlined_call_operand.vmem [shape: f32[1,128], index: 8, kind: input, shape index: {}]
  %s9 = inlined_call_operand.hbm [shape: f32[16,128], index: 9, kind: output, shape index: {}]
  %s10 = sld [smem:[#allocation0]]
  $region70: #{tpu_custom_call.1} parent=0
    _
  %s12 = ssub.s32 1, %s10
  %s13 = scalar_select 0, %s12, %s10
  $region1: #{tpu_custom_call.1} parent=0
    #allocation2 [shape = 'u8[16384]{0}', space=vmem, size = 0x4000, scoped, tag = 'input window, operand 0, single buffered']
    #allocation3 [shape = 's32[1]{0}', space=sflag, size = 0x4, scoped, tag = 'scoped memory for tpu_custom_call.1']
    #allocation4 [shape = 's32[1]{0}', space=sflag, size = 0x4, scoped, tag = 'scoped memory for tpu_custom_call.1']
    #allocation5 [shape = 'u8[16384]{0}', space=vmem, size = 0x4000, scoped, tag = 'input window, operand 1, single buffered']
    #allocation6 [shape = 's32[1]{0}', space=sflag, size = 0x4, scoped, tag = 'scoped memory for tpu_custom_call.1']
    #allocation7 [shape = 'u8[196608]{0}', space=vmem, size = 0x30000, scoped, tag = 'input window, operand 2, single buffered']
    #allocation8 [shape = 'u8[196608]{0}', space=vmem, size = 0x30000, scoped, tag = 'input window, operand 3, single buffered']
    #allocation9 [shape = 's32[1]{0}', space=sflag, size = 0x4, scoped, tag = 'scoped memory for tpu_custom_call.1']
    #allocation10 [shape = 'u8[98304]{0}', space=vmem, size = 0x18000, scoped, tag = 'input window, operand 5, single buffered']
    #allocation11 [shape = 'u8[65536]{0}', space=vmem, size = 0x10000, scoped, tag = 'input window, operand 7, single buffered']
    #allocation12 [shape = 's32[1]{0}', space=sflag, size = 0x4, scoped, tag = 'scoped memory for tpu_custom_call.1']
    #allocation13 [shape = 'u8[8192]{0}', space=vmem, size = 0x2000, scoped, tag = 'output window, operand 0, single buffered']
    %14 = vsyncpa [#allocation3], 0
    %15 = vsyncpa [#allocation6], 0
    %16 = vsyncpa [#allocation9], 0
    %17 = vsyncpa [#allocation12], 0
    %18 = vsyncpa [#allocation4], 0
    // Predicated region
    $region2: #{tpu_custom_call.1} parent=1 // pred_check
      _
    $region3: #{tpu_custom_call.1} parent=1 // pred_check_branch
      %20 = sbr.rel (0) target = $region5
    $region4: #{tpu_custom_call.1} parent=1 // pred_region
      %s22 = ssub.s32 512, 512
      %23 = vsyncadd [#allocation3], %s22
      %s24 = sshll.u32 [#allocation2], 4
      %s25 = int_to_ptr.vmem [resolvable:$true] %s24
      %30 = dma.hbm_to_vmem [thread:$0]  %s0, 512, %s25, [#allocation3], 256, 256, 16
    $region5: #{tpu_custom_call.1} parent=1 // pred_fallthru
      _
    // Predicated region
    $region6: #{tpu_custom_call.1} parent=1 // pred_check
      _
    $region7: #{tpu_custom_call.1} parent=1 // pred_check_branch
      %32 = sbr.rel (0) target = $region9
    $region8: #{tpu_custom_call.1} parent=1 // pred_region
      %s34 = ssub.s32 512, 512
      %35 = vsyncadd [#allocation6], %s34
      %s36 = sshll.u32 [#allocation5], 4
      %s37 = int_to_ptr.vmem [resolvable:$true] %s36
      %42 = dma.hbm_to_vmem [thread:$0]  %s1, 512, %s37, [#allocation6], 256, 256, 16
    $region9: #{tpu_custom_call.1} parent=1 // pred_fallthru
      _
    // Predicated region
    $region10: #{tpu_custom_call.1} parent=1 // pred_check
      _
    $region11: #{tpu_custom_call.1} parent=1 // pred_check_branch
      %44 = sbr.rel (0) target = $region13
    $region12: #{tpu_custom_call.1} parent=1 // pred_region
      %s46 = ssub.s32 6144, 6144
      %47 = vsyncadd [#allocation6], %s46
      %s48 = sshll.u32 [#allocation7], 4
      %s49 = int_to_ptr.vmem [resolvable:$true] %s48
      %54 = dma.hbm_to_vmem [thread:$0]  %s2, 6144, %s49, [#allocation6], 256, 256, 16
    $region13: #{tpu_custom_call.1} parent=1 // pred_fallthru
      _
    // Predicated region
    $region14: #{tpu_custom_call.1} parent=1 // pred_check
      _
    $region15: #{tpu_custom_call.1} parent=1 // pred_check_branch
      %56 = sbr.rel (0) target = $region17
    $region16: #{tpu_custom_call.1} parent=1 // pred_region
      %s58 = ssub.s32 6144, 6144
      %59 = vsyncadd [#allocation9], %s58
      %s60 = sshll.u32 [#allocation8], 4
      %s61 = int_to_ptr.vmem [resolvable:$true] %s60
      %66 = dma.hbm_to_vmem [thread:$0]  %s3, 6144, %s61, [#allocation9], 256, 256, 16
    $region17: #{tpu_custom_call.1} parent=1 // pred_fallthru
      _
    // Predicated region
    $region18: #{tpu_custom_call.1} parent=1 // pred_check
      _
    $region19: #{tpu_custom_call.1} parent=1 // pred_check_branch
      %68 = sbr.rel (0) target = $region21
    $region20: #{tpu_custom_call.1} parent=1 // pred_region
      _
    $region21: #{tpu_custom_call.1} parent=1 // pred_fallthru
      _
    // Predicated region
    $region22: #{tpu_custom_call.1} parent=1 // pred_check
      _
    $region23: #{tpu_custom_call.1} parent=1 // pred_check_branch
      %70 = sbr.rel (0) target = $region25
    $region24: #{tpu_custom_call.1} parent=1 // pred_region
      %s72 = ssub.s32 3072, 3072
      %73 = vsyncadd [#allocation9], %s72
      %s74 = sshll.u32 [#allocation10], 4
      %s75 = int_to_ptr.vmem [resolvable:$true] %s74
      %80 = dma.hbm_to_vmem [thread:$0]  %s5, 3072, %s75, [#allocation9], 128, 128, 8
    $region25: #{tpu_custom_call.1} parent=1 // pred_fallthru
      _
    // Predicated region
    $region26: #{tpu_custom_call.1} parent=1 // pred_check
      _
    $region27: #{tpu_custom_call.1} parent=1 // pred_check_branch
      %82 = sbr.rel (0) target = $region29
    $region28: #{tpu_custom_call.1} parent=1 // pred_region
      _
    $region29: #{tpu_custom_call.1} parent=1 // pred_fallthru
      _
    // Predicated region
    $region30: #{tpu_custom_call.1} parent=1 // pred_check
      _
    $region31: #{tpu_custom_call.1} parent=1 // pred_check_branch
      %84 = sbr.rel (0) target = $region33
    $region32: #{tpu_custom_call.1} parent=1 // pred_region
      %s86 = ssub.s32 2048, 2048
      %87 = vsyncadd [#allocation12], %s86
      %s88 = sshll.u32 [#allocation11], 4
      %s89 = int_to_ptr.vmem [resolvable:$true] %s88
      %94 = dma.hbm_to_vmem [thread:$0]  %s7, 2048, %s89, [#allocation12], 128, 128, 8
    $region33: #{tpu_custom_call.1} parent=1 // pred_fallthru
      _
    // Predicated region
    $region34: #{tpu_custom_call.1} parent=1 // pred_check
      _
    $region35: #{tpu_custom_call.1} parent=1 // pred_check_branch
      %96 = sbr.rel (0) target = $region37
    $region36: #{tpu_custom_call.1} parent=1 // pred_region
      _
    $region37: #{tpu_custom_call.1} parent=1 // pred_fallthru
      _
    // Predicated region
    $region38: #{tpu_custom_call.1} parent=1 // pred_check
      _
    $region39: #{tpu_custom_call.1} parent=1 // pred_check_branch
      %98 = sbr.rel (0) target = $region41
    $region40: #{tpu_custom_call.1} parent=1 // pred_region
      %99 = dma.done [#allocation3], 512
    $region41: #{tpu_custom_call.1} parent=1 // pred_fallthru
      _
    // Predicated region
    $region42: #{tpu_custom_call.1} parent=1 // pred_check
      _
    $region43: #{tpu_custom_call.1} parent=1 // pred_check_branch
      %101 = sbr.rel (0) target = $region45
    $region44: #{tpu_custom_call.1} parent=1 // pred_region
      %102 = dma.done [#allocation6], 512
    $region45: #{tpu_custom_call.1} parent=1 // pred_fallthru
      _
    // Predicated region
    $region46: #{tpu_custom_call.1} parent=1 // pred_check
      _
    $region47: #{tpu_custom_call.1} parent=1 // pred_check_branch
      %104 = sbr.rel (0) target = $region49
    $region48: #{tpu_custom_call.1} parent=1 // pred_region
      %105 = dma.done [#allocation6], 6144
    $region49: #{tpu_custom_call.1} parent=1 // pred_fallthru
      _
    // Predicated region
    $region50: #{tpu_custom_call.1} parent=1 // pred_check
      _
    $region51: #{tpu_custom_call.1} parent=1 // pred_check_branch
      %107 = sbr.rel (0) target = $region53
    $region52: #{tpu_custom_call.1} parent=1 // pred_region
      %108 = dma.done [#allocation9], 6144
    $region53: #{tpu_custom_call.1} parent=1 // pred_fallthru
      _
    // Predicated region
    $region54: #{tpu_custom_call.1} parent=1 // pred_check
      _
    $region55: #{tpu_custom_call.1} parent=1 // pred_check_branch
      %110 = sbr.rel (0) target = $region57
    $region56: #{tpu_custom_call.1} parent=1 // pred_region
      %111 = dma.done [#allocation9], 3072
    $region57: #{tpu_custom_call.1} parent=1 // pred_fallthru
      _
    // Predicated region
    $region58: #{tpu_custom_call.1} parent=1 // pred_check
      _
    $region59: #{tpu_custom_call.1} parent=1 // pred_check_branch
      %113 = sbr.rel (0) target = $region61
    $region60: #{tpu_custom_call.1} parent=1 // pred_region
      %114 = dma.done [#allocation12], 2048
    $region61: #{tpu_custom_call.1} parent=1 // pred_fallthru
      _
    %v115 = vld [vmem:[#allocation2] sm:$0xff]
    %v116 = vld [vmem:[#allocation2 + $0x8] sm:$0xff]
    %v117 = vld [vmem:[#allocation2 + $0x10] sm:$0xff]
    %v118 = vld [vmem:[#allocation2 + $0x18] sm:$0xff]
    %v119 = vld [vmem:[#allocation7] sm:$0xff]
    %v120 = vld [vmem:[#allocation7 + $0x8] sm:$0xff]
    %v121 = vld [vmem:[#allocation7 + $0x10] sm:$0xff]
    %v122 = vld [vmem:[#allocation7 + $0x18] sm:$0xff]
    %v123 = vld [vmem:[#allocation7 + $0x20] sm:$0xff]
    %v124 = vld [vmem:[#allocation7 + $0x28] sm:$0xff]
    %v125 = vld [vmem:[#allocation7 + $0x30] sm:$0xff]
    %v126 = vld [vmem:[#allocation7 + $0x38] sm:$0xff]
    %v127 = vld [vmem:[#allocation7 + $0x40] sm:$0xff]
    %v128 = vld [vmem:[#allocation7 + $0x48] sm:$0xff]
    %v129 = vld [vmem:[#allocation7 + $0x50] sm:$0xff]
    %v130 = vld [vmem:[#allocation7 + $0x58] sm:$0xff]
    %v131 = vld [vmem:[#allocation7 + $0x60] sm:$0xff]
    %v132 = vld [vmem:[#allocation7 + $0x68] sm:$0xff]
    %v133 = vld [vmem:[#allocation7 + $0x70] sm:$0xff]
    %v134 = vld [vmem:[#allocation7 + $0x78] sm:$0xff]
    %v135 = vld [vmem:[#allocation7 + $0x80] sm:$0xff]
    %v136 = vld [vmem:[#allocation7 + $0x88] sm:$0xff]
    %v137 = vld [vmem:[#allocation7 + $0x90] sm:$0xff]
    %v138 = vld [vmem:[#allocation7 + $0x98] sm:$0xff]
    %v139 = vld [vmem:[#allocation7 + $0xa0] sm:$0xff]
    %v140 = vld [vmem:[#allocation7 + $0xa8] sm:$0xff]
    %v141 = vld [vmem:[#allocation7 + $0xb0] sm:$0xff]
    %v142 = vld [vmem:[#allocation7 + $0xb8] sm:$0xff]
    %v143 = vld [vmem:[#allocation7 + $0xc0] sm:$0xff]
    %v144 = vld [vmem:[#allocation7 + $0xc8] sm:$0xff]
    %v145 = vld [vmem:[#allocation7 + $0xd0] sm:$0xff]
    %v146 = vld [vmem:[#allocation7 + $0xd8] sm:$0xff]
    %v147 = vld [vmem:[#allocation7 + $0xe0] sm:$0xff]
    %v148 = vld [vmem:[#allocation7 + $0xe8] sm:$0xff]
    %v149 = vld [vmem:[#allocation7 + $0xf0] sm:$0xff]
    %v150 = vld [vmem:[#allocation7 + $0xf8] sm:$0xff]
    %v151 = vld [vmem:[#allocation7 + $0x100] sm:$0xff]
    %v152 = vld [vmem:[#allocation7 + $0x108] sm:$0xff]
    %v153 = vld [vmem:[#allocation7 + $0x110] sm:$0xff]
    %v154 = vld [vmem:[#allocation7 + $0x118] sm:$0xff]
    %v155 = vld [vmem:[#allocation7 + $0x120] sm:$0xff]
    %v156 = vld [vmem:[#allocation7 + $0x128] sm:$0xff]
    %v157 = vld [vmem:[#allocation7 + $0x130] sm:$0xff]
    %v158 = vld [vmem:[#allocation7 + $0x138] sm:$0xff]
    %v159 = vld [vmem:[#allocation7 + $0x140] sm:$0xff]
    %v160 = vld [vmem:[#allocation7 + $0x148] sm:$0xff]
    %v161 = vld [vmem:[#allocation7 + $0x150] sm:$0xff]
    %v162 = vld [vmem:[#allocation7 + $0x158] sm:$0xff]
    %v163 = vld [vmem:[#allocation7 + $0x160] sm:$0xff]
    %v164 = vld [vmem:[#allocation7 + $0x168] sm:$0xff]
    %v165 = vld [vmem:[#allocation7 + $0x170] sm:$0xff]
    %v166 = vld [vmem:[#allocation7 + $0x178] sm:$0xff]
    %v167 = vld [vmem:[#allocation5] sm:$0xff]
    %v168 = vld [vmem:[#allocation5 + $0x8] sm:$0xff]
    %v169 = vld [vmem:[#allocation5 + $0x10] sm:$0xff]
    %v170 = vld [vmem:[#allocation5 + $0x18] sm:$0xff]
    %v171 = vld [vmem:[#allocation8] sm:$0xff]
    %v172 = vld [vmem:[#allocation8 + $0x8] sm:$0xff]
    %v173 = vld [vmem:[#allocation8 + $0x10] sm:$0xff]
    %v174 = vld [vmem:[#allocation8 + $0x18] sm:$0xff]
    %v175 = vld [vmem:[#allocation8 + $0x20] sm:$0xff]
    %v176 = vld [vmem:[#allocation8 + $0x28] sm:$0xff]
    %v177 = vld [vmem:[#allocation8 + $0x30] sm:$0xff]
    %v178 = vld [vmem:[#allocation8 + $0x38] sm:$0xff]
    %v179 = vld [vmem:[#allocation8 + $0x40] sm:$0xff]
    %v180 = vld [vmem:[#allocation8 + $0x48] sm:$0xff]
    %v181 = vld [vmem:[#allocation8 + $0x50] sm:$0xff]
    %v182 = vld [vmem:[#allocation8 + $0x58] sm:$0xff]
    %v183 = vld [vmem:[#allocation8 + $0x60] sm:$0xff]
    %v184 = vld [vmem:[#allocation8 + $0x68] sm:$0xff]
    %v185 = vld [vmem:[#allocation8 + $0x70] sm:$0xff]
    %v186 = vld [vmem:[#allocation8 + $0x78] sm:$0xff]
    %v187 = vld [vmem:[#allocation8 + $0x80] sm:$0xff]
    %v188 = vld [vmem:[#allocation8 + $0x88] sm:$0xff]
    %v189 = vld [vmem:[#allocation8 + $0x90] sm:$0xff]
    %v190 = vld [vmem:[#allocation8 + $0x98] sm:$0xff]
    %v191 = vld [vmem:[#allocation8 + $0xa0] sm:$0xff]
    %v192 = vld [vmem:[#allocation8 + $0xa8] sm:$0xff]
    %v193 = vld [vmem:[#allocation8 + $0xb0] sm:$0xff]
    %v194 = vld [vmem:[#allocation8 + $0xb8] sm:$0xff]
    %v195 = vld [vmem:[#allocation8 + $0xc0] sm:$0xff]
    %v196 = vld [vmem:[#allocation8 + $0xc8] sm:$0xff]
    %v197 = vld [vmem:[#allocation8 + $0xd0] sm:$0xff]
    %v198 = vld [vmem:[#allocation8 + $0xd8] sm:$0xff]
    %v199 = vld [vmem:[#allocation8 + $0xe0] sm:$0xff]
    %v200 = vld [vmem:[#allocation8 + $0xe8] sm:$0xff]
    %v201 = vld [vmem:[#allocation8 + $0xf0] sm:$0xff]
    %v202 = vld [vmem:[#allocation8 + $0xf8] sm:$0xff]
    %v203 = vld [vmem:[#allocation8 + $0x100] sm:$0xff]
    %v204 = vld [vmem:[#allocation8 + $0x108] sm:$0xff]
    %v205 = vld [vmem:[#allocation8 + $0x110] sm:$0xff]
    %v206 = vld [vmem:[#allocation8 + $0x118] sm:$0xff]
    %v207 = vld [vmem:[#allocation8 + $0x120] sm:$0xff]
    %v208 = vld [vmem:[#allocation8 + $0x128] sm:$0xff]
    %v209 = vld [vmem:[#allocation8 + $0x130] sm:$0xff]
    %v210 = vld [vmem:[#allocation8 + $0x138] sm:$0xff]
    %v211 = vld [vmem:[#allocation8 + $0x140] sm:$0xff]
    %v212 = vld [vmem:[#allocation8 + $0x148] sm:$0xff]
    %v213 = vld [vmem:[#allocation8 + $0x150] sm:$0xff]
    %v214 = vld [vmem:[#allocation8 + $0x158] sm:$0xff]
    %v215 = vld [vmem:[#allocation8 + $0x160] sm:$0xff]
    %v216 = vld [vmem:[#allocation8 + $0x168] sm:$0xff]
    %v217 = vld [vmem:[#allocation8 + $0x170] sm:$0xff]
    %v218 = vld [vmem:[#allocation8 + $0x178] sm:$0xff]
    %vm219 = vcmask 523264
    %v221 = vsel %vm219, %v168, 0
    %v224 = vsel %vm219, %v170, 0
    %226 = vmatprep.subr.mxu0 %v172
    %227 = vmatpush1.msra.mxu0 %v171
    %228 = vmatprep.subr.mxu0 %v174
    %229 = vmatpush1.msra.mxu0 %v173
    %230 = vmatprep.subr.mxu0 %v176
    %231 = vmatpush1.msra.mxu0 %v175
    %232 = vmatprep.subr.mxu0 %v178
    %233 = vmatpush1.msra.mxu0 %v177
    %234 = vmatprep.subr.mxu0 %v180
    %235 = vmatpush1.msra.mxu0 %v179
    %236 = vmatprep.subr.mxu0 %v182
    %237 = vmatpush1.msra.mxu0 %v181
    %238 = vmatprep.subr.mxu0 %v184
    %239 = vmatpush1.msra.mxu0 %v183
    %240 = vmatprep.subr.mxu0 %v186
    %241 = vmatpush1.msra.mxu0 %v185
    %242 = vmatprep.subr.mxu0 %v188
    %243 = vmatpush1.msra.mxu0 %v187
    %244 = vmatprep.subr.mxu0 %v190
    %245 = vmatpush1.msra.mxu0 %v189
    %246 = vmatprep.subr.mxu0 %v192
    %247 = vmatpush1.msra.mxu0 %v191
    %248 = vmatprep.subr.mxu0 %v194
    %249 = vmatpush1.msra.mxu0 %v193
    %250 = vmatprep.subr.mxu0 %v196
    %251 = vmatpush1.msra.mxu0 %v195
    %252 = vmatprep.subr.mxu0 %v198
    %253 = vmatpush1.msra.mxu0 %v197
    %254 = vmatprep.subr.mxu0 %v200
    %255 = vmatpush1.msra.mxu0 %v199
    %256 = vmatprep.subr.mxu0 %v202
    %257 = vmatpush1.msra.mxu0 %v201
    %258 = vmatprep.subr.mxu0 %v204
    %259 = vmatpush1.msra.mxu0 %v203
    %260 = vmatprep.subr.mxu0 %v206
    %261 = vmatpush1.msra.mxu0 %v205
    %262 = vmatprep.subr.mxu0 %v208
    %263 = vmatpush1.msra.mxu0 %v207
    %264 = vmatprep.subr.mxu0 %v210
    %265 = vmatpush1.msra.mxu0 %v209
    %266 = vmatprep.subr.mxu0 %v212
    %267 = vmatpush1.msra.mxu0 %v211
    %268 = vmatprep.subr.mxu0 %v214
    %269 = vmatpush1.msra.mxu0 %v213
    %270 = vmatprep.subr.mxu0 %v216
    %271 = vmatpush1.msra.mxu0 %v215
    %272 = vmatprep.subr.mxu0 %v218
    %273 = vmatpush1.msra.mxu0 %v217
    %274 = vmatprep.subr.mxu0 0.0
    %275 = vmatpush1.msra.mxu0 0.0
    %276 = vmatprep.subr.mxu0 0.0
    %277 = vmatpush1.msra.mxu0 0.0
    %278 = vmatprep.subr.mxu0 0.0
    %279 = vmatpush1.msra.mxu0 0.0
    %280 = vmatprep.subr.mxu0 0.0
    %281 = vmatpush1.msra.mxu0 0.0
    %282 = vmatprep.subr.mxu0 0.0
    %283 = vmatpush1.msra.mxu0 0.0
    %284 = vmatprep.subr.mxu0 0.0
    %285 = vmatpush1.msra.mxu0 0.0
    %286 = vmatprep.subr.mxu0 0.0
    %287 = vmatpush1.msra.mxu0 0.0
    %288 = vmatprep.subr.mxu0 0.0
    %289 = vmatpush1.msra.mxu0 0.0
    %290 = vmatprep.mubr.f32.mxu0 %v221
    %291 = vmatmul.mubr.f32.gmra.mrb[0].mxu0 %v167
    %v292 = vpop.f32.mrb[0].mxu0
    %v293 = vadd.f32 0.0, %v292
    %v294 = vpop.f32.mrb[0].mxu0
    %v295 = vadd.f32 0.0, %v294
    %296 = vmatprep.mubr.f32.mxu0 %v224
    %297 = vmatmul.mubr.f32.gmra.mrb[0].mxu0 %v169
    %v298 = vpop.f32.mrb[0].mxu0
    %v299 = vadd.f32 0.0, %v298
    %v300 = vpop.f32.mrb[0].mxu0
    %v301 = vadd.f32 0.0, %v300
    %302 = vdwg.mxu0
    %v304 = vsel %vm219, %v116, 0
    %v307 = vsel %vm219, %v118, 0
    %309 = vmatprep.subr.mxu0 %v120
    %310 = vmatpush1.msra.mxu0 %v119
    %311 = vmatprep.subr.mxu0 %v122
    %312 = vmatpush1.msra.mxu0 %v121
    %313 = vmatprep.subr.mxu0 %v124
    %314 = vmatpush1.msra.mxu0 %v123
    %315 = vmatprep.subr.mxu0 %v126
    %316 = vmatpush1.msra.mxu0 %v125
    %317 = vmatprep.subr.mxu0 %v128
    %318 = vmatpush1.msra.mxu0 %v127
    %319 = vmatprep.subr.mxu0 %v130
    %320 = vmatpush1.msra.mxu0 %v129
    %321 = vmatprep.subr.mxu0 %v132
    %322 = vmatpush1.msra.mxu0 %v131
    %323 = vmatprep.subr.mxu0 %v134
    %324 = vmatpush1.msra.mxu0 %v133
    %325 = vmatprep.subr.mxu0 %v136
    %326 = vmatpush1.msra.mxu0 %v135
    %327 = vmatprep.subr.mxu0 %v138
    %328 = vmatpush1.msra.mxu0 %v137
    %329 = vmatprep.subr.mxu0 %v140
    %330 = vmatpush1.msra.mxu0 %v139
    %331 = vmatprep.subr.mxu0 %v142
    %332 = vmatpush1.msra.mxu0 %v141
    %333 = vmatprep.subr.mxu0 %v144
    %334 = vmatpush1.msra.mxu0 %v143
    %335 = vmatprep.subr.mxu0 %v146
    %336 = vmatpush1.msra.mxu0 %v145
    %337 = vmatprep.subr.mxu0 %v148
    %338 = vmatpush1.msra.mxu0 %v147
    %339 = vmatprep.subr.mxu0 %v150
    %340 = vmatpush1.msra.mxu0 %v149
    %341 = vmatprep.subr.mxu0 %v152
    %342 = vmatpush1.msra.mxu0 %v151
    %343 = vmatprep.subr.mxu0 %v154
    %344 = vmatpush1.msra.mxu0 %v153
    %345 = vmatprep.subr.mxu0 %v156
    %346 = vmatpush1.msra.mxu0 %v155
    %347 = vmatprep.subr.mxu0 %v158
    %348 = vmatpush1.msra.mxu0 %v157
    %349 = vmatprep.subr.mxu0 %v160
    %350 = vmatpush1.msra.mxu0 %v159
    %351 = vmatprep.subr.mxu0 %v162
    %352 = vmatpush1.msra.mxu0 %v161
    %353 = vmatprep.subr.mxu0 %v164
    %354 = vmatpush1.msra.mxu0 %v163
    %355 = vmatprep.subr.mxu0 %v166
    %356 = vmatpush1.msra.mxu0 %v165
    %357 = vmatprep.subr.mxu0 0.0
    %358 = vmatpush1.msra.mxu0 0.0
    %359 = vmatprep.subr.mxu0 0.0
    %360 = vmatpush1.msra.mxu0 0.0
    %361 = vmatprep.subr.mxu0 0.0
    %362 = vmatpush1.msra.mxu0 0.0
    %363 = vmatprep.subr.mxu0 0.0
    %364 = vmatpush1.msra.mxu0 0.0
    %365 = vmatprep.subr.mxu0 0.0
    %366 = vmatpush1.msra.mxu0 0.0
    %367 = vmatprep.subr.mxu0 0.0
    %368 = vmatpush1.msra.mxu0 0.0
    %369 = vmatprep.subr.mxu0 0.0
    %370 = vmatpush1.msra.mxu0 0.0
    %371 = vmatprep.subr.mxu0 0.0
    %372 = vmatpush1.msra.mxu0 0.0
    %373 = vmatprep.mubr.f32.mxu0 %v304
    %374 = vmatmul.mubr.f32.gmra.mrb[0].mxu0 %v115
    %v375 = vpop.f32.mrb[0].mxu0
    %v376 = vadd.f32 %v293, %v375
    %v377 = vpop.f32.mrb[0].mxu0
    %v378 = vadd.f32 %v295, %v377
    %379 = vmatprep.mubr.f32.mxu0 %v307
    %380 = vmatmul.mubr.f32.gmra.mrb[0].mxu0 %v117
    %v381 = vpop.f32.mrb[0].mxu0
    %v382 = vadd.f32 %v299, %v381
    %v383 = vpop.f32.mrb[0].mxu0
    %v384 = vadd.f32 %v301, %v383
    %385 = vdwg.mxu0
    %v386 = vld [vmem:[%s4] sm:$0x3]
    %v388 = vlaneseq
    %v389 = vshrl.u32 %v388, 7
    %v390 = vsub.s32 0, %v389
    %v391 = vrot.slane %v386, %v390
    %v392 = vlaneseq
    %v393 = vshrl.u32 %v392, 7
    %v394 = vsub.s32 1, %v393
    %v395 = vrot.slane %v386, %v394
    %v398 = vadd.f32 %v376, %v391
    %v399 = vadd.f32 %v378, %v395
    %v400 = vadd.f32 %v382, %v391
    %v401 = vadd.f32 %v384, %v395
    %v402 = vmax.f32 %v398, 0.0
    %v403 = vmax.f32 %v399, 0.0
    %v404 = vmax.f32 %v400, 0.0
    %v405 = vmax.f32 %v401, 0.0
    %v406 = vld [vmem:[#allocation10] sm:$0xff]
    %v407 = vld [vmem:[#allocation10 + $0x8] sm:$0xff]
    %v408 = vld [vmem:[#allocation10 + $0x10] sm:$0xff]
    %v409 = vld [vmem:[#allocation10 + $0x18] sm:$0xff]
    %v410 = vld [vmem:[#allocation10 + $0x20] sm:$0xff]
    %v411 = vld [vmem:[#allocation10 + $0x28] sm:$0xff]
    %v412 = vld [vmem:[#allocation10 + $0x30] sm:$0xff]
    %v413 = vld [vmem:[#allocation10 + $0x38] sm:$0xff]
    %v414 = vld [vmem:[#allocation10 + $0x40] sm:$0xff]
    %v415 = vld [vmem:[#allocation10 + $0x48] sm:$0xff]
    %v416 = vld [vmem:[#allocation10 + $0x50] sm:$0xff]
    %v417 = vld [vmem:[#allocation10 + $0x58] sm:$0xff]
    %v418 = vld [vmem:[#allocation10 + $0x60] sm:$0xff]
    %v419 = vld [vmem:[#allocation10 + $0x68] sm:$0xff]
    %v420 = vld [vmem:[#allocation10 + $0x70] sm:$0xff]
    %v421 = vld [vmem:[#allocation10 + $0x78] sm:$0xff]
    %v422 = vld [vmem:[#allocation10 + $0x80] sm:$0xff]
    %v423 = vld [vmem:[#allocation10 + $0x88] sm:$0xff]
    %v424 = vld [vmem:[#allocation10 + $0x90] sm:$0xff]
    %v425 = vld [vmem:[#allocation10 + $0x98] sm:$0xff]
    %v426 = vld [vmem:[#allocation10 + $0xa0] sm:$0xff]
    %v427 = vld [vmem:[#allocation10 + $0xa8] sm:$0xff]
    %v428 = vld [vmem:[#allocation10 + $0xb0] sm:$0xff]
    %v429 = vld [vmem:[#allocation10 + $0xb8] sm:$0xff]
    %v430 = vld [vmem:[%s6] sm:$0x1]
    %v432 = vlaneseq
    %v433 = vshrl.u32 %v432, 7
    %v434 = vsub.s32 0, %v433
    %v435 = vrot.slane %v430, %v434
    %v438 = vsel %vm219, %v403, 0
    %v441 = vsel %vm219, %v405, 0
    %443 = vmatprep.subr.mxu0 0.0
    %444 = vmatpush1.msra.mxu0 %v406
    %445 = vmatprep.subr.mxu0 0.0
    %446 = vmatpush1.msra.mxu0 %v407
    %447 = vmatprep.subr.mxu0 0.0
    %448 = vmatpush1.msra.mxu0 %v408
    %449 = vmatprep.subr.mxu0 0.0
    %450 = vmatpush1.msra.mxu0 %v409
    %451 = vmatprep.subr.mxu0 0.0
    %452 = vmatpush1.msra.mxu0 %v410
    %453 = vmatprep.subr.mxu0 0.0
    %454 = vmatpush1.msra.mxu0 %v411
    %455 = vmatprep.subr.mxu0 0.0
    %456 = vmatpush1.msra.mxu0 %v412
    %457 = vmatprep.subr.mxu0 0.0
    %458 = vmatpush1.msra.mxu0 %v413
    %459 = vmatprep.subr.mxu0 0.0
    %460 = vmatpush1.msra.mxu0 %v414
    %461 = vmatprep.subr.mxu0 0.0
    %462 = vmatpush1.msra.mxu0 %v415
    %463 = vmatprep.subr.mxu0 0.0
    %464 = vmatpush1.msra.mxu0 %v416
    %465 = vmatprep.subr.mxu0 0.0
    %466 = vmatpush1.msra.mxu0 %v417
    %467 = vmatprep.subr.mxu0 0.0
    %468 = vmatpush1.msra.mxu0 %v418
    %469 = vmatprep.subr.mxu0 0.0
    %470 = vmatpush1.msra.mxu0 %v419
    %471 = vmatprep.subr.mxu0 0.0
    %472 = vmatpush1.msra.mxu0 %v420
    %473 = vmatprep.subr.mxu0 0.0
    %474 = vmatpush1.msra.mxu0 %v421
    %475 = vmatprep.subr.mxu0 0.0
    %476 = vmatpush1.msra.mxu0 %v422
    %477 = vmatprep.subr.mxu0 0.0
    %478 = vmatpush1.msra.mxu0 %v423
    %479 = vmatprep.subr.mxu0 0.0
    %480 = vmatpush1.msra.mxu0 %v424
    %481 = vmatprep.subr.mxu0 0.0
    %482 = vmatpush1.msra.mxu0 %v425
    %483 = vmatprep.subr.mxu0 0.0
    %484 = vmatpush1.msra.mxu0 %v426
    %485 = vmatprep.subr.mxu0 0.0
    %486 = vmatpush1.msra.mxu0 %v427
    %487 = vmatprep.subr.mxu0 0.0
    %488 = vmatpush1.msra.mxu0 %v428
    %489 = vmatprep.subr.mxu0 0.0
    %490 = vmatpush1.msra.mxu0 %v429
    %491 = vmatprep.subr.mxu0 0.0
    %492 = vmatpush1.msra.mxu0 0.0
    %493 = vmatprep.subr.mxu0 0.0
    %494 = vmatpush1.msra.mxu0 0.0
    %495 = vmatprep.subr.mxu0 0.0
    %496 = vmatpush1.msra.mxu0 0.0
    %497 = vmatprep.subr.mxu0 0.0
    %498 = vmatpush1.msra.mxu0 0.0
    %499 = vmatprep.subr.mxu0 0.0
    %500 = vmatpush1.msra.mxu0 0.0
    %501 = vmatprep.subr.mxu0 0.0
    %502 = vmatpush1.msra.mxu0 0.0
    %503 = vmatprep.subr.mxu0 0.0
    %504 = vmatpush1.msra.mxu0 0.0
    %505 = vmatprep.subr.mxu0 0.0
    %506 = vmatpush1.msra.mxu0 0.0
    %507 = vmatprep.mubr.f32.mxu0 %v438
    %508 = vmatmul.mubr.f32.gmra.mrb[0].mxu0 %v402
    %v509 = vpop.f32.mrb[0].mxu0
    %v510 = vadd.f32 %v435, %v509
    %v511 = vpop.f32.mrb[0].mxu0
    %512 = vmatprep.mubr.f32.mxu0 %v441
    %513 = vmatmul.mubr.f32.gmra.mrb[0].mxu0 %v404
    %v514 = vpop.f32.mrb[0].mxu0
    %v515 = vadd.f32 %v435, %v514
    %v516 = vpop.f32.mrb[0].mxu0
    %517 = vdwg.mxu0
    %v518 = vmax.f32 %v510, 0.0
    %v519 = vmax.f32 %v515, 0.0
    %v520 = vld [vmem:[#allocation11] sm:$0xff]
    %v521 = vld [vmem:[#allocation11 + $0x8] sm:$0xff]
    %v522 = vld [vmem:[#allocation11 + $0x10] sm:$0xff]
    %v523 = vld [vmem:[#allocation11 + $0x18] sm:$0xff]
    %v524 = vld [vmem:[#allocation11 + $0x20] sm:$0xff]
    %v525 = vld [vmem:[#allocation11 + $0x28] sm:$0xff]
    %v526 = vld [vmem:[#allocation11 + $0x30] sm:$0xff]
    %v527 = vld [vmem:[#allocation11 + $0x38] sm:$0xff]
    %v528 = vld [vmem:[#allocation11 + $0x40] sm:$0xff]
    %v529 = vld [vmem:[#allocation11 + $0x48] sm:$0xff]
    %v530 = vld [vmem:[#allocation11 + $0x50] sm:$0xff]
    %v531 = vld [vmem:[#allocation11 + $0x58] sm:$0xff]
    %v532 = vld [vmem:[#allocation11 + $0x60] sm:$0xff]
    %v533 = vld [vmem:[#allocation11 + $0x68] sm:$0xff]
    %v534 = vld [vmem:[#allocation11 + $0x70] sm:$0xff]
    %v535 = vld [vmem:[#allocation11 + $0x78] sm:$0xff]
    %v536 = vld [vmem:[%s8] sm:$0x1]
    %v538 = vlaneseq
    %v539 = vshrl.u32 %v538, 7
    %v540 = vsub.s32 0, %v539
    %v541 = vrot.slane %v536, %v540
    %543 = vmatprep.subr.mxu0 0.0
    %544 = vmatpush1.msra.mxu0 %v520
    %545 = vmatprep.subr.mxu0 0.0
    %546 = vmatpush1.msra.mxu0 %v521
    %547 = vmatprep.subr.mxu0 0.0
    %548 = vmatpush1.msra.mxu0 %v522
    %549 = vmatprep.subr.mxu0 0.0
    %550 = vmatpush1.msra.mxu0 %v523
    %551 = vmatprep.subr.mxu0 0.0
    %552 = vmatpush1.msra.mxu0 %v524
    %553 = vmatprep.subr.mxu0 0.0
    %554 = vmatpush1.msra.mxu0 %v525
    %555 = vmatprep.subr.mxu0 0.0
    %556 = vmatpush1.msra.mxu0 %v526
    %557 = vmatprep.subr.mxu0 0.0
    %558 = vmatpush1.msra.mxu0 %v527
    %559 = vmatprep.subr.mxu0 0.0
    %560 = vmatpush1.msra.mxu0 %v528
    %561 = vmatprep.subr.mxu0 0.0
    %562 = vmatpush1.msra.mxu0 %v529
    %563 = vmatprep.subr.mxu0 0.0
    %564 = vmatpush1.msra.mxu0 %v530
    %565 = vmatprep.subr.mxu0 0.0
    %566 = vmatpush1.msra.mxu0 %v531
    %567 = vmatprep.subr.mxu0 0.0
    %568 = vmatpush1.msra.mxu0 %v532
    %569 = vmatprep.subr.mxu0 0.0
    %570 = vmatpush1.msra.mxu0 %v533
    %571 = vmatprep.subr.mxu0 0.0
    %572 = vmatpush1.msra.mxu0 %v534
    %573 = vmatprep.subr.mxu0 0.0
    %574 = vmatpush1.msra.mxu0 %v535
    %575 = vmatprep.subr.mxu0 0.0
    %576 = vmatpush1.msra.mxu0 0.0
    %577 = vmatprep.subr.mxu0 0.0
    %578 = vmatpush1.msra.mxu0 0.0
    %579 = vmatprep.subr.mxu0 0.0
    %580 = vmatpush1.msra.mxu0 0.0
    %581 = vmatprep.subr.mxu0 0.0
    %582 = vmatpush1.msra.mxu0 0.0
    %583 = vmatprep.subr.mxu0 0.0
    %584 = vmatpush1.msra.mxu0 0.0
    %585 = vmatprep.subr.mxu0 0.0
    %586 = vmatpush1.msra.mxu0 0.0
    %587 = vmatprep.subr.mxu0 0.0
    %588 = vmatpush1.msra.mxu0 0.0
    %589 = vmatprep.subr.mxu0 0.0
    %590 = vmatpush1.msra.mxu0 0.0
    %591 = vmatprep.subr.mxu0 0.0
    %592 = vmatpush1.msra.mxu0 0.0
    %593 = vmatprep.subr.mxu0 0.0
    %594 = vmatpush1.msra.mxu0 0.0
    %595 = vmatprep.subr.mxu0 0.0
    %596 = vmatpush1.msra.mxu0 0.0
    %597 = vmatprep.subr.mxu0 0.0
    %598 = vmatpush1.msra.mxu0 0.0
    %599 = vmatprep.subr.mxu0 0.0
    %600 = vmatpush1.msra.mxu0 0.0
    %601 = vmatprep.subr.mxu0 0.0
    %602 = vmatpush1.msra.mxu0 0.0
    %603 = vmatprep.subr.mxu0 0.0
    %604 = vmatpush1.msra.mxu0 0.0
    %605 = vmatprep.subr.mxu0 0.0
    %606 = vmatpush1.msra.mxu0 0.0
    %607 = vmatprep.mubr.f32.mxu0 0.0
    %608 = vmatmul.mubr.f32.gmra.mrb[0].mxu0 %v518
    %v609 = vpop.f32.mrb[0].mxu0
    %v610 = vadd.f32 %v541, %v609
    %v611 = vpop.f32.mrb[0].mxu0
    %612 = vmatprep.mubr.f32.mxu0 0.0
    %613 = vmatmul.mubr.f32.gmra.mrb[0].mxu0 %v519
    %v614 = vpop.f32.mrb[0].mxu0
    %v615 = vadd.f32 %v541, %v614
    %v616 = vpop.f32.mrb[0].mxu0
    %617 = vdwg.mxu0
    %618 = vst [vmem:[#allocation13] sm:$0xff] %v610
    %619 = vst [vmem:[#allocation13 + $0x8] sm:$0xff] %v615
    // Predicated region
    $region62: #{tpu_custom_call.1} parent=1 // pred_check
      _
    $region63: #{tpu_custom_call.1} parent=1 // pred_check_branch
      %621 = sbr.rel (0) target = $region65
    $region64: #{tpu_custom_call.1} parent=1 // pred_region
      %s623 = ssub.s32 256, 256
      %624 = vsyncadd [#allocation4], %s623
      %s625 = sshll.u32 [#allocation13], 4
      %s626 = int_to_ptr.vmem [resolvable:$true] %s625
      %631 = dma.vmem_to_hbm [thread:$0]  %s626, 256, %s9, [#allocation4], 128, 128, 8
    $region65: #{tpu_custom_call.1} parent=1 // pred_fallthru
      _
    // Predicated region
    $region66: #{tpu_custom_call.1} parent=1 // pred_check
      _
    $region67: #{tpu_custom_call.1} parent=1 // pred_check_branch
      %633 = sbr.rel (0) target = $region69
    $region68: #{tpu_custom_call.1} parent=1 // pred_region
      %634 = dma.done [#allocation4], 256
    $region69: #{tpu_custom_call.1} parent=1 // pred_fallthru
      _
    %635 = vsyncpa [#allocation3], 1
    %636 = vsyncpa [#allocation6], 1
    %637 = vsyncpa [#allocation9], 1
    %638 = vsyncpa [#allocation12], 1
    %639 = vsyncpa [#allocation4], 1

</llo_original>
